<compile_context>
chip_gen: v7x
topology: tpu7x:2x2x1
jax: 0.10.0
libtpu: 0.0.40
codegen_flags: <defaults>
</compile_context>

<pallas_src>
import math
import jax
import jax.numpy as jnp
from jax.experimental import pallas as pl
from jax.experimental.pallas import tpu as pltpu


def _round_up(x, m):
    return ((x + m - 1) // m) * m


def _linear_general_kernel(x_ref, w_ref, b_ref, o_ref, acc_ref):
    # x_ref : (tm, tk)   token tile
    # w_ref : (tk, tn)   weight tile
    # b_ref : (1,  tn)   bias tile
    # o_ref : (tm, tn)   output tile
    # acc_ref: (tm, tn)  f32 accumulator (VMEM scratch, persists over k)
    k = pl.program_id(2)

    @pl.when(k == 0)
    def _():
        # Fold the bias add into the accumulator init (one broadcast per (i, j) tile).
        acc_ref[...] = jnp.broadcast_to(
            b_ref[...].astype(jnp.float32), acc_ref.shape)

    # Native-dtype operands (bf16 -> native MXU path), f32 accumulation.
    acc_ref[...] += jnp.dot(x_ref[...], w_ref[...],
                            preferred_element_type=jnp.float32)

    @pl.when(k == pl.num_programs(2) - 1)
    def _():
        o_ref[...] = acc_ref[...].astype(o_ref.dtype)


def _matmul_bias(x2d, w2d, b2d, out_dtype, *, tm, tn, tk):
    M, K = x2d.shape
    K2, N = w2d.shape
    assert K == K2

    # --- choose lane/sublane-aligned tile sizes, pad arrays to match ---------
    tm_eff = min(_round_up(tm, 8), _round_up(M, 8))
    M_pad = _round_up(M, tm_eff)

    K_pad = _round_up(K, 128)
    tk_eff = min(_round_up(tk, 128), K_pad)
    if K_pad % tk_eff != 0:
        tk_eff = K_pad

    N_pad = _round_up(N, 128)
    tn_eff = min(_round_up(tn, 128), N_pad)
    if N_pad % tn_eff != 0:
        tn_eff = N_pad

    if (M_pad, K_pad) != (M, K):
        x2d = jnp.pad(x2d, ((0, M_pad - M), (0, K_pad - K)))
    if (K_pad, N_pad) != (K, N):
        w2d = jnp.pad(w2d, ((0, K_pad - K), (0, N_pad - N)))
    if N_pad != N:
        b2d = jnp.pad(b2d, ((0, 0), (0, N_pad - N)))

    gm, gn, gk = M_pad // tm_eff, N_pad // tn_eff, K_pad // tk_eff

    out_itemsize = jnp.dtype(out_dtype).itemsize
    cost = pl.CostEstimate(
        flops=2 * M_pad * K_pad * N_pad,
        transcendentals=0,
        bytes_accessed=(x2d.size * x2d.dtype.itemsize * gn
                        + w2d.size * w2d.dtype.itemsize * gm
                        + b2d.size * b2d.dtype.itemsize * gm
                        + M_pad * N_pad * out_itemsize),
    )

    out2d = pl.pallas_call(
        _linear_general_kernel,
        out_shape=jax.ShapeDtypeStruct((M_pad, N_pad), out_dtype),
        grid=(gm, gn, gk),
        in_specs=[
            pl.BlockSpec((tm_eff, tk_eff), lambda i, j, k: (i, k)),   # x tile
            pl.BlockSpec((tk_eff, tn_eff), lambda i, j, k: (k, j)),   # W tile
            pl.BlockSpec((1, tn_eff), lambda i, j, k: (0, j)),        # bias tile
        ],
        out_specs=pl.BlockSpec((tm_eff, tn_eff), lambda i, j, k: (i, j)),
        scratch_shapes=[pltpu.VMEM((tm_eff, tn_eff), jnp.float32)],
        compiler_params=pltpu.CompilerParams(
            dimension_semantics=("parallel", "parallel", "arbitrary"),
            # Tiles are streamed (not full-weight resident); 48 MiB leaves
            # headroom for double-buffering even on v7x's 64 MiB / TC.
            vmem_limit_bytes=48 * 1024 * 1024,
        ),
        cost_estimate=cost,
    )(x2d, w2d, b2d)

    if (M_pad, N_pad) != (M, N):
        out2d = out2d[:M, :N]
    return out2d


def linear_general(x, weight, bias, dims, *, tm=256, tn=256, tk=512):
    """Pallas equivalent of LinearGeneral.forward(x, dims).

    x      : arbitrary-rank array
    weight : shape (*in_dim, *feat_dim)
    bias   : shape (*feat_dim)
    dims   : tensordot dims, e.g. ([2], [0]) or an int n (contract last n of x
             with first n of weight).
    """
    if isinstance(dims, int):
        x_axes = list(range(x.ndim - dims, x.ndim))
        w_axes = list(range(dims))
    else:
        x_axes = [int(a) % x.ndim for a in dims[0]]
        w_axes = [int(a) % weight.ndim for a in dims[1]]

    batch_axes = [a for a in range(x.ndim) if a not in x_axes]
    feat_axes = [a for a in range(weight.ndim) if a not in w_axes]
    batch_shape = tuple(x.shape[a] for a in batch_axes)
    feat_shape = tuple(weight.shape[a] for a in feat_axes)

    K = math.prod(x.shape[a] for a in x_axes) if x_axes else 1
    Kw = math.prod(weight.shape[a] for a in w_axes) if w_axes else 1
    assert K == Kw, "contracted dimensions must match"
    M = math.prod(batch_shape) if batch_shape else 1
    N = math.prod(feat_shape) if feat_shape else 1

    # Layout plumbing (outside the kernel): contracted axes last on x / first
    # on W so the kernel sees a plain lane-dense GEMM.
    x2d = jnp.transpose(x, tuple(batch_axes + x_axes)).reshape(M, K)
    w2d = jnp.transpose(weight, tuple(w_axes + feat_axes)).reshape(K, N)
    b2d = bias.reshape(1, N)

    out_dtype = jnp.result_type(x.dtype, weight.dtype)
    out2d = _matmul_bias(x2d, w2d, b2d, out_dtype, tm=tm, tn=tn, tk=tk)
    return out2d.reshape(batch_shape + feat_shape)


if __name__ == "__main__":
    key = jax.random.PRNGKey(0)
    kx, kw, kb = jax.random.split(key, 3)

    # Module defaults: in_dim=(768,), feat_dim=(12, 64); small batch/seq.
    B, S = 2, 8
    in_dim, feat_dim = (768,), (12, 64)
    dims = ([2], [0])

    x = jax.random.normal(kx, (B, S) + in_dim, dtype=jnp.float32)
    weight = jax.random.normal(kw, in_dim + feat_dim, dtype=jnp.float32)
    bias = jax.random.normal(kb, feat_dim, dtype=jnp.float32)

    out = linear_general(x, weight, bias, dims)
    out = jax.block_until_ready(out)
    assert out.shape == (B, S) + feat_dim, out.shape

    # Pure-JAX reference (high-precision f32 tensordot).
    ref = jnp.tensordot(x, weight, axes=dims,
                        precision=jax.lax.Precision.HIGHEST) + bias
    assert jnp.allclose(out, ref, rtol=1e-2, atol=1e-2), "mismatch vs reference"

    print("KERNEL_OK")
</pallas_src>

<mosaic_0001>
module attributes {stable_mosaic.version = 11 : i64} {
  func.func @_linear_general_kernel(%arg0: i32, %arg1: i32, %arg2: i32, %arg3: memref<16x768xf32, #tpu.memory_space<vmem>>, %arg4: memref<768x256xf32, #tpu.memory_space<vmem>>, %arg5: memref<1x256xf32, #tpu.memory_space<vmem>>, %arg6: memref<16x256xf32, #tpu.memory_space<vmem>>, %arg7: memref<16x256xf32, #tpu.memory_space<vmem>>) attributes {dimension_semantics = [#tpu.dimension_semantics<parallel>, #tpu.dimension_semantics<parallel>, #tpu.dimension_semantics<arbitrary>], iteration_bounds = array<i64: 1, 3, 1>, scalar_prefetch = 0 : i64, scratch_operands = 1 : i64, tpu.core_type = #tpu.core_type<tc>, window_params = [{transform_indices = @transform_0, window_bounds = array<i64: 16, 768>}, {transform_indices = @transform_1, window_bounds = array<i64: 768, 256>}, {transform_indices = @transform_2, window_bounds = array<i64: 1, 256>}, {transform_indices = @transform_3, window_bounds = array<i64: 16, 256>}]} {
    %c0_i32 = arith.constant 0 : i32
    %0 = arith.cmpi eq, %arg2, %c0_i32 : i32
    %1 = arith.extui %0 : i1 to i32
    %c0_i32_0 = arith.constant 0 : i32
    %2 = arith.cmpi ne, %1, %c0_i32_0 : i32
    scf.if %2 {
      %c0_10 = arith.constant 0 : index
      %c0_11 = arith.constant 0 : index
      %12 = vector.load %arg5[%c0_10, %c0_11] : memref<1x256xf32, #tpu.memory_space<vmem>>, vector<1x256xf32>
      %13 = vector.shape_cast %12 : vector<1x256xf32> to vector<1x256xf32>
      %14 = vector.broadcast %13 : vector<1x256xf32> to vector<16x256xf32>
      %c0_12 = arith.constant 0 : index
      %c0_13 = arith.constant 0 : index
      %15 = vector.load %arg7[%c0_12, %c0_13] : memref<16x256xf32, #tpu.memory_space<vmem>>, vector<16x256xf32>
      tpu.vector_store %arg7[%c0_12, %c0_13], %14 {strides = array<i32>} : memref<16x256xf32, #tpu.memory_space<vmem>>, vector<16x256xf32>,
    } else {
    }
    %c0 = arith.constant 0 : index
    %c0_1 = arith.constant 0 : index
    %3 = vector.load %arg7[%c0, %c0_1] : memref<16x256xf32, #tpu.memory_space<vmem>>, vector<16x256xf32>
    %c0_2 = arith.constant 0 : index
    %c0_3 = arith.constant 0 : index
    %4 = vector.load %arg3[%c0_2, %c0_3] : memref<16x768xf32, #tpu.memory_space<vmem>>, vector<16x768xf32>
    %c0_4 = arith.constant 0 : index
    %c0_5 = arith.constant 0 : index
    %5 = vector.load %arg4[%c0_4, %c0_5] : memref<768x256xf32, #tpu.memory_space<vmem>>, vector<768x256xf32>
    %cst = arith.constant dense<0.000000e+00> : vector<16x256xf32>
    %6 = tpu.matmul %4, %5, %cst {dimension_numbers = #tpu.dot_dimension_numbers<[1], [0], [0], [1], [0, 0, 1, 1], [], []>} : vector<16x768xf32>, vector<768x256xf32>, vector<16x256xf32> -> vector<16x256xf32>
    %7 = arith.addf %3, %6 : vector<16x256xf32>
    %c0_6 = arith.constant 0 : index
    %c0_7 = arith.constant 0 : index
    %8 = vector.load %arg7[%c0_6, %c0_7] : memref<16x256xf32, #tpu.memory_space<vmem>>, vector<16x256xf32>
    tpu.vector_store %arg7[%c0_6, %c0_7], %7 {strides = array<i32>} : memref<16x256xf32, #tpu.memory_space<vmem>>, vector<16x256xf32>,
    %c0_i32_8 = arith.constant 0 : i32
    %9 = arith.cmpi eq, %arg2, %c0_i32_8 : i32
    %10 = arith.extui %9 : i1 to i32
    %c0_i32_9 = arith.constant 0 : i32
    %11 = arith.cmpi ne, %10, %c0_i32_9 : i32
    scf.if %11 {
      %c0_10 = arith.constant 0 : index
      %c0_11 = arith.constant 0 : index
      %12 = vector.load %arg7[%c0_10, %c0_11] : memref<16x256xf32, #tpu.memory_space<vmem>>, vector<16x256xf32>
      %c0_12 = arith.constant 0 : index
      %c0_13 = arith.constant 0 : index
      %13 = vector.load %arg6[%c0_12, %c0_13] : memref<16x256xf32, #tpu.memory_space<vmem>>, vector<16x256xf32>
      tpu.vector_store %arg6[%c0_12, %c0_13], %12 {strides = array<i32>} : memref<16x256xf32, #tpu.memory_space<vmem>>, vector<16x256xf32>,
    } else {
    }
    return
  }
  func.func @transform_0(%arg0: i32, %arg1: i32, %arg2: i32) -> (i32, i32) {
    %c0_i32 = arith.constant 0 : i32
    return %arg0, %arg2 : i32, i32
  }
  func.func @transform_1(%arg0: i32, %arg1: i32, %arg2: i32) -> (i32, i32) {
    %c0_i32 = arith.constant 0 : i32
    return %arg2, %arg1 : i32, i32
  }
  func.func @transform_2(%arg0: i32, %arg1: i32, %arg2: i32) -> (i32, i32) {
    %c0_i32 = arith.constant 0 : i32
    %c0_i32_0 = arith.constant 0 : i32
    return %c0_i32, %arg1 : i32, i32
  }
  func.func @transform_3(%arg0: i32, %arg1: i32, %arg2: i32) -> (i32, i32) {
    %c0_i32 = arith.constant 0 : i32
    return %arg0, %arg1 : i32, i32
  }
}

</mosaic_0001>

<llo_original>
// kernel: tpu_custom_call.1
$region0: #{tpu_custom_call.1}
  #allocation0 [shape = 'u32[]', space=smem, size = 0x4, offset = 0x4, fixed_abs, tag = 'smem constant byte address 0x4 - core index']
  #allocation1 [shape = 'u32[144,128]{1,0:T(1,128)}', space=vmem, size = 0x12000, scoped, tag = 'internal scratch']
  #allocation2 [shape = 'f32[16,256]{1,0:T(8,128)}', space=vmem, size = 0x4000, scoped, tag = 'scratch operand']
  %s0 = inlined_call_operand.hbm [shape: f32[16,768], index: 0, kind: input, shape index: {}]
  %s1 = inlined_call_operand.hbm [shape: f32[768,768], index: 1, kind: input, shape index: {}]
  %s2 = inlined_call_operand.hbm [shape: f32[1,768], index: 2, kind: input, shape index: {}]
  %s3 = inlined_call_operand.hbm [shape: f32[16,768], index: 3, kind: output, shape index: {}]
  %s4 = sld [smem:[#allocation0]]
  $region65: #{tpu_custom_call.1} parent=0
    _
  %s6 = ssub.s32 1, %s4
  %s7 = scalar_select 0, %s6, %s4
  $region1: #{tpu_custom_call.1} parent=0
    #allocation3 [shape = 'u8[49152]{0}', space=vmem, size = 0xc000, scoped, tag = 'input window, operand 0, single buffered']
    #allocation4 [shape = 's32[2]{0}', space=sflag, size = 0x8, scoped, tag = 'scoped memory for tpu_custom_call.1']
    #allocation5 [shape = 's32[2]{0}', space=sflag, size = 0x8, scoped, tag = 'scoped memory for tpu_custom_call.1']
    #allocation6 [shape = 'u8[1572864]{0}', space=vmem, size = 0x180000, scoped, tag = 'input window, operand 1']
    #allocation7 [shape = 's32[2]{0}', space=sflag, size = 0x8, scoped, tag = 'scoped memory for tpu_custom_call.1']
    #allocation8 [shape = 'u8[2048]{0}', space=vmem, size = 0x800, scoped, tag = 'input window, operand 2']
    #allocation9 [shape = 'u8[32768]{0}', space=vmem, size = 0x8000, scoped, tag = 'output window, operand 0']
    %8 = vsyncpa [#allocation4], 0
    %9 = vsyncpa [#allocation7], 0
    %s10 = scalar_lea.sflag [#allocation7], 1
    %11 = vsyncpa %s10, 0
    %12 = vsyncpa [#allocation5], 0
    %s13 = scalar_lea.sflag [#allocation5], 1
    %14 = vsyncpa %s13, 0
    loop: start=0, step=1, limit=5
    $region2: #{tpu_custom_call.1} parent=1 // loop_pre_header
      _
    $region3: #{tpu_custom_call.1} parent=1 // loop_header
      %s16 = sphi 0, %s20
      %p17 = scmp.ge.s32.totalorder %s16, 5
      %s23 = sphi 0, %s42
      %s24 = sphi 0, %s38
      %s25 = sphi 0, %s34
      %s26 = sphi 0, %s23
      %s27 = sphi 0, %s24
      %s28 = sphi 0, %s25
      %s29 = sphi 0, %s26
      %s30 = sphi 0, %s27
      %s31 = sphi 0, %s28
      %s47 = sphi 0, %s49
      %s50 = sphi 0, %s47
      %s51 = sphi 0, %s50
      %s67 = sphi 0, %s51
      %s75 = sphi 0, %s77
      %s78 = sphi 0, %s75
      %s79 = sphi 0, %s78
      %s95 = sphi 0, %s79
      %s101 = sphi 0, %s103
      %s104 = sphi 0, %s101
      %s105 = sphi 0, %s104
      %s121 = sphi 0, %s105
      %s129 = sphi 0, %s131
      %s132 = sphi 0, %s129
      %s133 = sphi 0, %s132
      %s149 = sphi 0, %s133
    $region4: #{tpu_custom_call.1} parent=1 // loop_header_branch
      %19 = sbr.rel (%p17) target = $region8
    $region5: #{tpu_custom_call.1} parent=1 // loop_body
      %s21 = ssub.s32 %s16, 1
      %s22 = ssub.s32 %s16, 2
      %s32 = sadd.s32 1, %s25
      %p33 = scmp.ge.s32.totalorder %s32, 1
      %s34 = scalar_select %p33, 0, %s32
      %s35 = sadd.s32 1, %s24
      %s36 = scalar_select %p33, %s35, %s24
      %p37 = scmp.ge.s32.totalorder %s36, 3
      %s38 = scalar_select %p37, 0, %s36
      %s39 = sadd.s32 1, %s23
      %s40 = scalar_select %p37, %s39, %s23
      %p41 = scmp.ge.s32.totalorder %s40, 1
      %s42 = scalar_select %p41, 0, %s40
      %s43 = ssub.s32 %s23, %s42
      %s44 = ssub.s32 %s25, %s34
      %s45 = sor.u32 %s43, %s44
      %p46 = scmp.eq.s32.totalorder %s45, 0
      %s48 = sadd.s32 %s47, 1
      %s49 = scalar_select %p46, %s47, %s48
      %p52 = pneg %p46
      %p53 = scmp.eq.s32.totalorder %s16, 2
      %p54 = por %p52, %p53
      %p55 = scmp.ne.s32.totalorder %s47, %s50
      %p56 = scmp.eq.s32.totalorder %s16, 0
      %p57 = por %p55, %p56
      %p58 = scmp.ne.s32.totalorder %s47, %s50
      %p59 = scmp.eq.s32.totalorder %s21, 2
      %p60 = por %p58, %p59
      %p61 = scmp.ne.s32.totalorder %s50, %s51
      %p62 = scmp.eq.s32.totalorder %s21, 0
      %p63 = por %p61, %p62
      %p64 = scmp.ne.s32.totalorder %s50, %s51
      %p65 = scmp.eq.s32.totalorder %s22, 2
      %p66 = por %p64, %p65
      %p68 = scmp.ne.s32.totalorder %s51, %s67
      %p69 = scmp.eq.s32.totalorder %s22, 0
      %p70 = por %p68, %p69
      %s71 = ssub.s32 %s25, %s34
      %s72 = ssub.s32 %s24, %s38
      %s73 = sor.u32 %s71, %s72
      %p74 = scmp.eq.s32.totalorder %s73, 0
      %s76 = sadd.s32 %s75, 1
      %s77 = scalar_select %p74, %s75, %s76
      %p80 = pneg %p74
      %p81 = scmp.eq.s32.totalorder %s16, 2
      %p82 = por %p80, %p81
      %p83 = scmp.ne.s32.totalorder %s75, %s78
      %p84 = scmp.eq.s32.totalorder %s16, 0
      %p85 = por %p83, %p84
      %p86 = scmp.ne.s32.totalorder %s75, %s78
      %p87 = scmp.eq.s32.totalorder %s21, 2
      %p88 = por %p86, %p87
      %p89 = scmp.ne.s32.totalorder %s78, %s79
      %p90 = scmp.eq.s32.totalorder %s21, 0
      %p91 = por %p89, %p90
      %p92 = scmp.ne.s32.totalorder %s78, %s79
      %p93 = scmp.eq.s32.totalorder %s22, 2
      %p94 = por %p92, %p93
      %p96 = scmp.ne.s32.totalorder %s79, %s95
      %p97 = scmp.eq.s32.totalorder %s22, 0
      %p98 = por %p96, %p97
      %s99 = ssub.s32 %s24, %s38
      %p100 = scmp.eq.s32.totalorder %s99, 0
      %s102 = sadd.s32 %s101, 1
      %s103 = scalar_select %p100, %s101, %s102
      %p106 = pneg %p100
      %p107 = scmp.eq.s32.totalorder %s16, 2
      %p108 = por %p106, %p107
      %p109 = scmp.ne.s32.totalorder %s101, %s104
      %p110 = scmp.eq.s32.totalorder %s16, 0
      %p111 = por %p109, %p110
      %p112 = scmp.ne.s32.totalorder %s101, %s104
      %p113 = scmp.eq.s32.totalorder %s21, 2
      %p114 = por %p112, %p113
      %p115 = scmp.ne.s32.totalorder %s104, %s105
      %p116 = scmp.eq.s32.totalorder %s21, 0
      %p117 = por %p115, %p116
      %p118 = scmp.ne.s32.totalorder %s104, %s105
      %p119 = scmp.eq.s32.totalorder %s22, 2
      %p120 = por %p118, %p119
      %p122 = scmp.ne.s32.totalorder %s105, %s121
      %p123 = scmp.eq.s32.totalorder %s22, 0
      %p124 = por %p122, %p123
      %s125 = ssub.s32 %s23, %s42
      %s126 = ssub.s32 %s24, %s38
      %s127 = sor.u32 %s125, %s126
      %p128 = scmp.eq.s32.totalorder %s127, 0
      %s130 = sadd.s32 %s129, 1
      %s131 = scalar_select %p128, %s129, %s130
      %p134 = pneg %p128
      %p135 = scmp.eq.s32.totalorder %s16, 2
      %p136 = por %p134, %p135
      %p137 = scmp.ne.s32.totalorder %s129, %s132
      %p138 = scmp.eq.s32.totalorder %s16, 0
      %p139 = por %p137, %p138
      %p140 = scmp.ne.s32.totalorder %s129, %s132
      %p141 = scmp.eq.s32.totalorder %s21, 2
      %p142 = por %p140, %p141
      %p143 = scmp.ne.s32.totalorder %s132, %s133
      %p144 = scmp.eq.s32.totalorder %s21, 0
      %p145 = por %p143, %p144
      %p146 = scmp.ne.s32.totalorder %s132, %s133
      %p147 = scmp.eq.s32.totalorder %s22, 2
      %p148 = por %p146, %p147
      %p150 = scmp.ne.s32.totalorder %s133, %s149
      %p151 = scmp.eq.s32.totalorder %s22, 0
      %p152 = por %p150, %p151
      %p153 = scmp.le.s32.totalorder 1, %s16
      %p154 = scmp.lt.s32.totalorder %s16, 4
      %p155 = pnand %p153, %p154
      %p156 = pneg %p155
      // Predicated region
      $region9: #{tpu_custom_call.1} parent=5 // pred_check
        _
      $region10: #{tpu_custom_call.1} parent=5 // pred_check_branch
        %158 = sbr.rel (%p155) target = $region12
      $region11: #{tpu_custom_call.1} parent=5 // pred_region
        %s159 = ssub.s32 %s16, 1
        // Predicated region
        $region13: #{tpu_custom_call.1} parent=11 // pred_check
          %p160 = pneg %p63
        $region14: #{tpu_custom_call.1} parent=11 // pred_check_branch
          %162 = sbr.rel (%p160) target = $region16
        $region15: #{tpu_custom_call.1} parent=11 // pred_region
          %s163 = smul.u32 2, %s26
          %s164 = smul.u32 6, %s28
          %s166 = ssub.s32 1536, 1536
          %167 = vsyncadd [#allocation4], %s166
          %s168 = smul.addr %s163, 6
          %s169 = sadd.s32 %s164, %s168
          %s170 = smul.addr %s169, 128
          %s171 = scalar_lea.hbm %s0, %s170
          %s172 = sshll.u32 [#allocation3], 4
          %s173 = int_to_ptr.vmem [resolvable:$true] %s172
          %178 = dma.hbm_to_vmem [thread:$0]  %s171, 1536, %s173, [#allocation4], 768, 768, 48
        $region16: #{tpu_custom_call.1} parent=11 // pred_fallthru
          _
      $region12: #{tpu_custom_call.1} parent=5 // pred_fallthru
        _
      %p179 = scmp.lt.s32.totalorder %s16, 3
      // Predicated region
      $region17: #{tpu_custom_call.1} parent=5 // pred_check
        %p180 = pneg %p179
      $region18: #{tpu_custom_call.1} parent=5 // pred_check_branch
        %182 = sbr.rel (%p180) target = $region20
      $region19: #{tpu_custom_call.1} parent=5 // pred_region
        // Predicated region
        $region21: #{tpu_custom_call.1} parent=19 // pred_check
          %p183 = pneg %p85
        $region22: #{tpu_custom_call.1} parent=19 // pred_check_branch
          %185 = sbr.rel (%p183) target = $region24
        $region23: #{tpu_custom_call.1} parent=19 // pred_region
          %s186 = sand.u32 %s16, 1
          %s187 = scalar_lea.sflag [#allocation7], %s186
          %s188 = sand.u32 %s75, 1
          %s189 = smul.addr %s188, 1536
          %s190 = scalar_lea.vmem [#allocation6], %s189
          %s191 = smul.u32 96, %s25
          %s192 = smul.u32 2, %s24
          %s194 = ssub.s32 24576, 24576
          %195 = vsyncadd %s187, %s194
          %s196 = smul.addr %s191, 6
          %s197 = sadd.s32 %s192, %s196
          %s198 = smul.addr %s197, 128
          %s199 = scalar_lea.hbm %s1, %s198
          %s200 = sshll.u32 %s190, 4
          %s201 = int_to_ptr.vmem [resolvable:$true] %s200
          %206 = dma.hbm_to_vmem [thread:$0]  %s199, 24576, %s201, %s187, 768, 256, 16
        $region24: #{tpu_custom_call.1} parent=19 // pred_fallthru
          _
        // Predicated region
        $region25: #{tpu_custom_call.1} parent=19 // pred_check
          %p207 = pneg %p111
        $region26: #{tpu_custom_call.1} parent=19 // pred_check_branch
          %209 = sbr.rel (%p207) target = $region28
        $region27: #{tpu_custom_call.1} parent=19 // pred_region
          %s210 = sand.u32 %s16, 1
          %s211 = scalar_lea.sflag [#allocation7], %s210
          %s212 = sand.u32 %s101, 1
          %s213 = smul.addr %s212, 2
          %s214 = scalar_lea.vmem [#allocation8], %s213
          %s215 = smul.u32 2, %s24
          %s217 = ssub.s32 32, 32
          %218 = vsyncadd %s211, %s217
          %s219 = smul.addr %s215, 16
          %s220 = scalar_lea.hbm %s2, %s219
          %s222 = sshll.u32 %s214, 4
          %s223 = int_to_ptr.vmem [resolvable:$true] %s222
          %225 = dma.hbm_to_vmem [thread:$0]  %s220, 32, %s223, %s211
        $region28: #{tpu_custom_call.1} parent=19 // pred_fallthru
          _
      $region20: #{tpu_custom_call.1} parent=5 // pred_fallthru
        _
      %p226 = scmp.le.s32.totalorder 1, %s16
      %p227 = scmp.lt.s32.totalorder %s16, 4
      %p228 = pnand %p226, %p227
      %p229 = pneg %p228
      // Predicated region
      $region29: #{tpu_custom_call.1} parent=5 // pred_check
        _
      $region30: #{tpu_custom_call.1} parent=5 // pred_check_branch
        %231 = sbr.rel (%p228) target = $region32
      $region31: #{tpu_custom_call.1} parent=5 // pred_region
        %s232 = ssub.s32 %s16, 1
        // Predicated region
        $region33: #{tpu_custom_call.1} parent=31 // pred_check
          %p233 = pneg %p63
        $region34: #{tpu_custom_call.1} parent=31 // pred_check_branch
          %235 = sbr.rel (%p233) target = $region36
        $region35: #{tpu_custom_call.1} parent=31 // pred_region
          %236 = dma.done [#allocation4], 1536
        $region36: #{tpu_custom_call.1} parent=31 // pred_fallthru
          _
        %s237 = sand.u32 %s21, 1
        %s238 = scalar_lea.sflag [#allocation7], %s237
        %s239 = sand.u32 %s78, 1
        %s240 = smul.addr %s239, 1536
        %s241 = scalar_lea.vmem [#allocation6], %s240
        // Predicated region
        $region37: #{tpu_custom_call.1} parent=31 // pred_check
          %p242 = pneg %p91
        $region38: #{tpu_custom_call.1} parent=31 // pred_check_branch
          %244 = sbr.rel (%p242) target = $region40
        $region39: #{tpu_custom_call.1} parent=31 // pred_region
          %245 = dma.done %s238, 24576
        $region40: #{tpu_custom_call.1} parent=31 // pred_fallthru
          _
        %s246 = sand.u32 %s21, 1
        %s247 = scalar_lea.sflag [#allocation7], %s246
        %s248 = sand.u32 %s104, 1
        %s249 = smul.addr %s248, 2
        %s250 = scalar_lea.vmem [#allocation8], %s249
        // Predicated region
        $region41: #{tpu_custom_call.1} parent=31 // pred_check
          %p251 = pneg %p117
        $region42: #{tpu_custom_call.1} parent=31 // pred_check_branch
          %253 = sbr.rel (%p251) target = $region44
        $region43: #{tpu_custom_call.1} parent=31 // pred_region
          %254 = dma.done %s247, 32
        $region44: #{tpu_custom_call.1} parent=31 // pred_fallthru
          _
        %p255 = pneg %p63
        %p256 = pneg %p60
        %s257 = sand.u32 %s21, 1
        %s258 = scalar_lea.sflag [#allocation7], %s257
        %s259 = sand.u32 %s78, 1
        %s260 = smul.addr %s259, 1536
        %s261 = scalar_lea.vmem [#allocation6], %s260
        %p262 = pneg %p91
        %p263 = pneg %p88
        %s264 = sand.u32 %s21, 1
        %s265 = scalar_lea.sflag [#allocation7], %s264
        %s266 = sand.u32 %s104, 1
        %s267 = smul.addr %s266, 2
        %s268 = scalar_lea.vmem [#allocation8], %s267
        %p269 = pneg %p117
        %p270 = pneg %p114
        %p271 = pneg %p145
        %p272 = pneg %p142
        %s273 = sand.u32 %s132, 1
        %s274 = scalar_lea.sflag [#allocation5], %s273
        %s275 = sand.u32 %s132, 1
        %s276 = smul.addr %s275, 32
        %s277 = scalar_lea.vmem [#allocation9], %s276
        %s278 = smul.u32 2, %s26
        %s279 = smul.u32 6, %s28
        %s280 = smul.u32 96, %s28
        %s281 = smul.u32 2, %s27
        %s282 = smul.u32 2, %s27
        %s283 = smul.u32 2, %s26
        %s284 = smul.u32 2, %s27
        %p285 = scmp.eq.s32.totalorder %s28, 0
        // Predicated region
        $region45: #{tpu_custom_call.1} parent=31 // pred_check
          %p286 = pneg %p285
        $region46: #{tpu_custom_call.1} parent=31 // pred_check_branch
          %288 = sbr.rel (%p286) target = $region48
        $region47: #{tpu_custom_call.1} parent=31 // pred_region
          %v289 = vld [vmem:[%s250] sm:$0x3]
          %v291 = vlaneseq
          %v292 = vshrl.u32 %v291, 7
          %v293 = vsub.s32 0, %v292
          %v294 = vrot.slane %v289, %v293
          %v295 = vlaneseq
          %v296 = vshrl.u32 %v295, 7
          %v297 = vsub.s32 1, %v296
          %v298 = vrot.slane %v289, %v297
          %301 = vst [vmem:[#allocation2] sm:$0xff] %v294
          %302 = vst [vmem:[#allocation2 + $0x8] sm:$0xff] %v298
          %303 = vst [vmem:[#allocation2 + $0x10] sm:$0xff] %v294
          %304 = vst [vmem:[#allocation2 + $0x18] sm:$0xff] %v298
        $region48: #{tpu_custom_call.1} parent=31 // pred_fallthru
          _
        %v305 = vld [vmem:[#allocation2] sm:$0xff]
        %v306 = vld [vmem:[#allocation2 + $0x8] sm:$0xff]
        %v307 = vld [vmem:[#allocation2 + $0x10] sm:$0xff]
        %v308 = vld [vmem:[#allocation2 + $0x18] sm:$0xff]
        %v309 = vld [vmem:[#allocation3] sm:$0xff]
        %v310 = vld [vmem:[#allocation3 + $0x8] sm:$0xff]
        %v311 = vld [vmem:[#allocation3 + $0x10] sm:$0xff]
        %v312 = vld [vmem:[#allocation3 + $0x18] sm:$0xff]
        %v313 = vld [vmem:[#allocation3 + $0x20] sm:$0xff]
        %v314 = vld [vmem:[#allocation3 + $0x28] sm:$0xff]
        %v315 = vld [vmem:[#allocation3 + $0x30] sm:$0xff]
        %v316 = vld [vmem:[#allocation3 + $0x38] sm:$0xff]
        %v317 = vld [vmem:[#allocation3 + $0x40] sm:$0xff]
        %v318 = vld [vmem:[#allocation3 + $0x48] sm:$0xff]
        %v319 = vld [vmem:[#allocation3 + $0x50] sm:$0xff]
        %v320 = vld [vmem:[#allocation3 + $0x58] sm:$0xff]
        %v321 = vld [vmem:[%s241] sm:$0xff]
        %v322 = vld [vmem:[%s241 + $0x8] sm:$0xff]
        %v323 = vld [vmem:[%s241 + $0x10] sm:$0xff]
        %v324 = vld [vmem:[%s241 + $0x18] sm:$0xff]
        %v325 = vld [vmem:[%s241 + $0x20] sm:$0xff]
        %v326 = vld [vmem:[%s241 + $0x28] sm:$0xff]
        %v327 = vld [vmem:[%s241 + $0x30] sm:$0xff]
        %v328 = vld [vmem:[%s241 + $0x38] sm:$0xff]
        %v329 = vld [vmem:[%s241 + $0x40] sm:$0xff]
        %v330 = vld [vmem:[%s241 + $0x48] sm:$0xff]
        %v331 = vld [vmem:[%s241 + $0x50] sm:$0xff]
        %v332 = vld [vmem:[%s241 + $0x58] sm:$0xff]
        %v333 = vld [vmem:[%s241 + $0x60] sm:$0xff]
        %v334 = vld [vmem:[%s241 + $0x68] sm:$0xff]
        %v335 = vld [vmem:[%s241 + $0x70] sm:$0xff]
        %v336 = vld [vmem:[%s241 + $0x78] sm:$0xff]
        %v337 = vld [vmem:[%s241 + $0x80] sm:$0xff]
        %v338 = vld [vmem:[%s241 + $0x88] sm:$0xff]
        %v339 = vld [vmem:[%s241 + $0x90] sm:$0xff]
        %v340 = vld [vmem:[%s241 + $0x98] sm:$0xff]
        %v341 = vld [vmem:[%s241 + $0xa0] sm:$0xff]
        %v342 = vld [vmem:[%s241 + $0xa8] sm:$0xff]
        %v343 = vld [vmem:[%s241 + $0xb0] sm:$0xff]
        %v344 = vld [vmem:[%s241 + $0xb8] sm:$0xff]
        %v345 = vld [vmem:[%s241 + $0xc0] sm:$0xff]
        %v346 = vld [vmem:[%s241 + $0xc8] sm:$0xff]
        %v347 = vld [vmem:[%s241 + $0xd0] sm:$0xff]
        %v348 = vld [vmem:[%s241 + $0xd8] sm:$0xff]
        %v349 = vld [vmem:[%s241 + $0xe0] sm:$0xff]
        %v350 = vld [vmem:[%s241 + $0xe8] sm:$0xff]
        %v351 = vld [vmem:[%s241 + $0xf0] sm:$0xff]
        %v352 = vld [vmem:[%s241 + $0xf8] sm:$0xff]
        %v353 = vld [vmem:[%s241 + $0x100] sm:$0xff]
        %v354 = vld [vmem:[%s241 + $0x108] sm:$0xff]
        %v355 = vld [vmem:[%s241 + $0x110] sm:$0xff]
        %v356 = vld [vmem:[%s241 + $0x118] sm:$0xff]
        %v357 = vld [vmem:[%s241 + $0x120] sm:$0xff]
        %v358 = vld [vmem:[%s241 + $0x128] sm:$0xff]
        %v359 = vld [vmem:[%s241 + $0x130] sm:$0xff]
        %v360 = vld [vmem:[%s241 + $0x138] sm:$0xff]
        %v361 = vld [vmem:[%s241 + $0x140] sm:$0xff]
        %v362 = vld [vmem:[%s241 + $0x148] sm:$0xff]
        %v363 = vld [vmem:[%s241 + $0x150] sm:$0xff]
        %v364 = vld [vmem:[%s241 + $0x158] sm:$0xff]
        %v365 = vld [vmem:[%s241 + $0x160] sm:$0xff]
        %v366 = vld [vmem:[%s241 + $0x168] sm:$0xff]
        %v367 = vld [vmem:[%s241 + $0x170] sm:$0xff]
        %v368 = vld [vmem:[%s241 + $0x178] sm:$0xff]
        %v369 = vld [vmem:[%s241 + $0x180] sm:$0xff]
        %v370 = vld [vmem:[%s241 + $0x188] sm:$0xff]
        %v371 = vld [vmem:[%s241 + $0x190] sm:$0xff]
        %v372 = vld [vmem:[%s241 + $0x198] sm:$0xff]
        %v373 = vld [vmem:[%s241 + $0x1a0] sm:$0xff]
        %v374 = vld [vmem:[%s241 + $0x1a8] sm:$0xff]
        %v375 = vld [vmem:[%s241 + $0x1b0] sm:$0xff]
        %v376 = vld [vmem:[%s241 + $0x1b8] sm:$0xff]
        %v377 = vld [vmem:[%s241 + $0x1c0] sm:$0xff]
        %v378 = vld [vmem:[%s241 + $0x1c8] sm:$0xff]
        %v379 = vld [vmem:[%s241 + $0x1d0] sm:$0xff]
        %v380 = vld [vmem:[%s241 + $0x1d8] sm:$0xff]
        %v381 = vld [vmem:[%s241 + $0x1e0] sm:$0xff]
        %v382 = vld [vmem:[%s241 + $0x1e8] sm:$0xff]
        %v383 = vld [vmem:[%s241 + $0x1f0] sm:$0xff]
        %v384 = vld [vmem:[%s241 + $0x1f8] sm:$0xff]
        %v385 = vld [vmem:[%s241 + $0x200] sm:$0xff]
        %v386 = vld [vmem:[%s241 + $0x208] sm:$0xff]
        %v387 = vld [vmem:[%s241 + $0x210] sm:$0xff]
        %v388 = vld [vmem:[%s241 + $0x218] sm:$0xff]
        %v389 = vld [vmem:[%s241 + $0x220] sm:$0xff]
        %v390 = vld [vmem:[%s241 + $0x228] sm:$0xff]
        %v391 = vld [vmem:[%s241 + $0x230] sm:$0xff]
        %v392 = vld [vmem:[%s241 + $0x238] sm:$0xff]
        %v393 = vld [vmem:[%s241 + $0x240] sm:$0xff]
        %v394 = vld [vmem:[%s241 + $0x248] sm:$0xff]
        %v395 = vld [vmem:[%s241 + $0x250] sm:$0xff]
        %v396 = vld [vmem:[%s241 + $0x258] sm:$0xff]
        %v397 = vld [vmem:[%s241 + $0x260] sm:$0xff]
        %v398 = vld [vmem:[%s241 + $0x268] sm:$0xff]
        %v399 = vld [vmem:[%s241 + $0x270] sm:$0xff]
        %v400 = vld [vmem:[%s241 + $0x278] sm:$0xff]
        %v401 = vld [vmem:[%s241 + $0x280] sm:$0xff]
        %v402 = vld [vmem:[%s241 + $0x288] sm:$0xff]
        %v403 = vld [vmem:[%s241 + $0x290] sm:$0xff]
        %v404 = vld [vmem:[%s241 + $0x298] sm:$0xff]
        %v405 = vld [vmem:[%s241 + $0x2a0] sm:$0xff]
        %v406 = vld [vmem:[%s241 + $0x2a8] sm:$0xff]
        %v407 = vld [vmem:[%s241 + $0x2b0] sm:$0xff]
        %v408 = vld [vmem:[%s241 + $0x2b8] sm:$0xff]
        %v409 = vld [vmem:[%s241 + $0x2c0] sm:$0xff]
        %v410 = vld [vmem:[%s241 + $0x2c8] sm:$0xff]
        %v411 = vld [vmem:[%s241 + $0x2d0] sm:$0xff]
        %v412 = vld [vmem:[%s241 + $0x2d8] sm:$0xff]
        %v413 = vld [vmem:[%s241 + $0x2e0] sm:$0xff]
        %v414 = vld [vmem:[%s241 + $0x2e8] sm:$0xff]
        %v415 = vld [vmem:[%s241 + $0x2f0] sm:$0xff]
        %v416 = vld [vmem:[%s241 + $0x2f8] sm:$0xff]
        %v417 = vld [vmem:[%s241 + $0x300] sm:$0xff]
        %v418 = vld [vmem:[%s241 + $0x308] sm:$0xff]
        %v419 = vld [vmem:[%s241 + $0x310] sm:$0xff]
        %v420 = vld [vmem:[%s241 + $0x318] sm:$0xff]
        %v421 = vld [vmem:[%s241 + $0x320] sm:$0xff]
        %v422 = vld [vmem:[%s241 + $0x328] sm:$0xff]
        %v423 = vld [vmem:[%s241 + $0x330] sm:$0xff]
        %v424 = vld [vmem:[%s241 + $0x338] sm:$0xff]
        %v425 = vld [vmem:[%s241 + $0x340] sm:$0xff]
        %v426 = vld [vmem:[%s241 + $0x348] sm:$0xff]
        %v427 = vld [vmem:[%s241 + $0x350] sm:$0xff]
        %v428 = vld [vmem:[%s241 + $0x358] sm:$0xff]
        %v429 = vld [vmem:[%s241 + $0x360] sm:$0xff]
        %v430 = vld [vmem:[%s241 + $0x368] sm:$0xff]
        %v431 = vld [vmem:[%s241 + $0x370] sm:$0xff]
        %v432 = vld [vmem:[%s241 + $0x378] sm:$0xff]
        %v433 = vld [vmem:[%s241 + $0x380] sm:$0xff]
        %v434 = vld [vmem:[%s241 + $0x388] sm:$0xff]
        %v435 = vld [vmem:[%s241 + $0x390] sm:$0xff]
        %v436 = vld [vmem:[%s241 + $0x398] sm:$0xff]
        %v437 = vld [vmem:[%s241 + $0x3a0] sm:$0xff]
        %v438 = vld [vmem:[%s241 + $0x3a8] sm:$0xff]
        %v439 = vld [vmem:[%s241 + $0x3b0] sm:$0xff]
        %v440 = vld [vmem:[%s241 + $0x3b8] sm:$0xff]
        %v441 = vld [vmem:[%s241 + $0x3c0] sm:$0xff]
        %v442 = vld [vmem:[%s241 + $0x3c8] sm:$0xff]
        %v443 = vld [vmem:[%s241 + $0x3d0] sm:$0xff]
        %v444 = vld [vmem:[%s241 + $0x3d8] sm:$0xff]
        %v445 = vld [vmem:[%s241 + $0x3e0] sm:$0xff]
        %v446 = vld [vmem:[%s241 + $0x3e8] sm:$0xff]
        %v447 = vld [vmem:[%s241 + $0x3f0] sm:$0xff]
        %v448 = vld [vmem:[%s241 + $0x3f8] sm:$0xff]
        %v449 = vld [vmem:[%s241 + $0x400] sm:$0xff]
        %v450 = vld [vmem:[%s241 + $0x408] sm:$0xff]
        %v451 = vld [vmem:[%s241 + $0x410] sm:$0xff]
        %v452 = vld [vmem:[%s241 + $0x418] sm:$0xff]
        %v453 = vld [vmem:[%s241 + $0x420] sm:$0xff]
        %v454 = vld [vmem:[%s241 + $0x428] sm:$0xff]
        %v455 = vld [vmem:[%s241 + $0x430] sm:$0xff]
        %v456 = vld [vmem:[%s241 + $0x438] sm:$0xff]
        %v457 = vld [vmem:[%s241 + $0x440] sm:$0xff]
        %v458 = vld [vmem:[%s241 + $0x448] sm:$0xff]
        %v459 = vld [vmem:[%s241 + $0x450] sm:$0xff]
        %v460 = vld [vmem:[%s241 + $0x458] sm:$0xff]
        %v461 = vld [vmem:[%s241 + $0x460] sm:$0xff]
        %v462 = vld [vmem:[%s241 + $0x468] sm:$0xff]
        %v463 = vld [vmem:[%s241 + $0x470] sm:$0xff]
        %v464 = vld [vmem:[%s241 + $0x478] sm:$0xff]
        %v465 = vld [vmem:[%s241 + $0x480] sm:$0xff]
        %v466 = vld [vmem:[%s241 + $0x488] sm:$0xff]
        %v467 = vld [vmem:[%s241 + $0x490] sm:$0xff]
        %v468 = vld [vmem:[%s241 + $0x498] sm:$0xff]
        %v469 = vld [vmem:[%s241 + $0x4a0] sm:$0xff]
        %v470 = vld [vmem:[%s241 + $0x4a8] sm:$0xff]
        %v471 = vld [vmem:[%s241 + $0x4b0] sm:$0xff]
        %v472 = vld [vmem:[%s241 + $0x4b8] sm:$0xff]
        %v473 = vld [vmem:[%s241 + $0x4c0] sm:$0xff]
        %v474 = vld [vmem:[%s241 + $0x4c8] sm:$0xff]
        %v475 = vld [vmem:[%s241 + $0x4d0] sm:$0xff]
        %v476 = vld [vmem:[%s241 + $0x4d8] sm:$0xff]
        %v477 = vld [vmem:[%s241 + $0x4e0] sm:$0xff]
        %v478 = vld [vmem:[%s241 + $0x4e8] sm:$0xff]
        %v479 = vld [vmem:[%s241 + $0x4f0] sm:$0xff]
        %v480 = vld [vmem:[%s241 + $0x4f8] sm:$0xff]
        %v481 = vld [vmem:[%s241 + $0x500] sm:$0xff]
        %v482 = vld [vmem:[%s241 + $0x508] sm:$0xff]
        %v483 = vld [vmem:[%s241 + $0x510] sm:$0xff]
        %v484 = vld [vmem:[%s241 + $0x518] sm:$0xff]
        %v485 = vld [vmem:[%s241 + $0x520] sm:$0xff]
        %v486 = vld [vmem:[%s241 + $0x528] sm:$0xff]
        %v487 = vld [vmem:[%s241 + $0x530] sm:$0xff]
        %v488 = vld [vmem:[%s241 + $0x538] sm:$0xff]
        %v489 = vld [vmem:[%s241 + $0x540] sm:$0xff]
        %v490 = vld [vmem:[%s241 + $0x548] sm:$0xff]
        %v491 = vld [vmem:[%s241 + $0x550] sm:$0xff]
        %v492 = vld [vmem:[%s241 + $0x558] sm:$0xff]
        %v493 = vld [vmem:[%s241 + $0x560] sm:$0xff]
        %v494 = vld [vmem:[%s241 + $0x568] sm:$0xff]
        %v495 = vld [vmem:[%s241 + $0x570] sm:$0xff]
        %v496 = vld [vmem:[%s241 + $0x578] sm:$0xff]
        %v497 = vld [vmem:[%s241 + $0x580] sm:$0xff]
        %v498 = vld [vmem:[%s241 + $0x588] sm:$0xff]
        %v499 = vld [vmem:[%s241 + $0x590] sm:$0xff]
        %v500 = vld [vmem:[%s241 + $0x598] sm:$0xff]
        %v501 = vld [vmem:[%s241 + $0x5a0] sm:$0xff]
        %v502 = vld [vmem:[%s241 + $0x5a8] sm:$0xff]
        %v503 = vld [vmem:[%s241 + $0x5b0] sm:$0xff]
        %v504 = vld [vmem:[%s241 + $0x5b8] sm:$0xff]
        %v505 = vld [vmem:[%s241 + $0x5c0] sm:$0xff]
        %v506 = vld [vmem:[%s241 + $0x5c8] sm:$0xff]
        %v507 = vld [vmem:[%s241 + $0x5d0] sm:$0xff]
        %v508 = vld [vmem:[%s241 + $0x5d8] sm:$0xff]
        %v509 = vld [vmem:[%s241 + $0x5e0] sm:$0xff]
        %v510 = vld [vmem:[%s241 + $0x5e8] sm:$0xff]
        %v511 = vld [vmem:[%s241 + $0x5f0] sm:$0xff]
        %v512 = vld [vmem:[%s241 + $0x5f8] sm:$0xff]
        %513 = vmatprep.subr.mxu0 %v322
        %514 = vmatpush1.msra.mxu0 %v321
        %515 = vmatprep.subr.mxu0 %v324
        %516 = vmatpush1.msra.mxu0 %v323
        %517 = vmatprep.subr.mxu0 %v326
        %518 = vmatpush1.msra.mxu0 %v325
        %519 = vmatprep.subr.mxu0 %v328
        %520 = vmatpush1.msra.mxu0 %v327
        %521 = vmatprep.subr.mxu0 %v330
        %522 = vmatpush1.msra.mxu0 %v329
        %523 = vmatprep.subr.mxu0 %v332
        %524 = vmatpush1.msra.mxu0 %v331
        %525 = vmatprep.subr.mxu0 %v334
        %526 = vmatpush1.msra.mxu0 %v333
        %527 = vmatprep.subr.mxu0 %v336
        %528 = vmatpush1.msra.mxu0 %v335
        %529 = vmatprep.subr.mxu0 %v338
        %530 = vmatpush1.msra.mxu0 %v337
        %531 = vmatprep.subr.mxu0 %v340
        %532 = vmatpush1.msra.mxu0 %v339
        %533 = vmatprep.subr.mxu0 %v342
        %534 = vmatpush1.msra.mxu0 %v341
        %535 = vmatprep.subr.mxu0 %v344
        %536 = vmatpush1.msra.mxu0 %v343
        %537 = vmatprep.subr.mxu0 %v346
        %538 = vmatpush1.msra.mxu0 %v345
        %539 = vmatprep.subr.mxu0 %v348
        %540 = vmatpush1.msra.mxu0 %v347
        %541 = vmatprep.subr.mxu0 %v350
        %542 = vmatpush1.msra.mxu0 %v349
        %543 = vmatprep.subr.mxu0 %v352
        %544 = vmatpush1.msra.mxu0 %v351
        %545 = vmatprep.subr.mxu0 %v354
        %546 = vmatpush1.msra.mxu0 %v353
        %547 = vmatprep.subr.mxu0 %v356
        %548 = vmatpush1.msra.mxu0 %v355
        %549 = vmatprep.subr.mxu0 %v358
        %550 = vmatpush1.msra.mxu0 %v357
        %551 = vmatprep.subr.mxu0 %v360
        %552 = vmatpush1.msra.mxu0 %v359
        %553 = vmatprep.subr.mxu0 %v362
        %554 = vmatpush1.msra.mxu0 %v361
        %555 = vmatprep.subr.mxu0 %v364
        %556 = vmatpush1.msra.mxu0 %v363
        %557 = vmatprep.subr.mxu0 %v366
        %558 = vmatpush1.msra.mxu0 %v365
        %559 = vmatprep.subr.mxu0 %v368
        %560 = vmatpush1.msra.mxu0 %v367
        %561 = vmatprep.subr.mxu0 %v370
        %562 = vmatpush1.msra.mxu0 %v369
        %563 = vmatprep.subr.mxu0 %v372
        %564 = vmatpush1.msra.mxu0 %v371
        %565 = vmatprep.subr.mxu0 %v374
        %566 = vmatpush1.msra.mxu0 %v373
        %567 = vmatprep.subr.mxu0 %v376
        %568 = vmatpush1.msra.mxu0 %v375
        %569 = vmatprep.subr.mxu0 %v378
        %570 = vmatpush1.msra.mxu0 %v377
        %571 = vmatprep.subr.mxu0 %v380
        %572 = vmatpush1.msra.mxu0 %v379
        %573 = vmatprep.subr.mxu0 %v382
        %574 = vmatpush1.msra.mxu0 %v381
        %575 = vmatprep.subr.mxu0 %v384
        %576 = vmatpush1.msra.mxu0 %v383
        %577 = vmatprep.mubr.f32.mxu0 %v310
        %578 = vmatmul.mubr.f32.gmra.mrb[0].mxu0 %v309
        %v579 = vpop.f32.mrb[0].mxu0
        %v580 = vadd.f32 0.0, %v579
        %v581 = vpop.f32.mrb[0].mxu0
        %v582 = vadd.f32 0.0, %v581
        %583 = vmatprep.mubr.f32.mxu0 %v316
        %584 = vmatmul.mubr.f32.gmra.mrb[0].mxu0 %v315
        %v585 = vpop.f32.mrb[0].mxu0
        %v586 = vadd.f32 0.0, %v585
        %v587 = vpop.f32.mrb[0].mxu0
        %v588 = vadd.f32 0.0, %v587
        %589 = vdwg.mxu0
        %590 = vmatprep.subr.mxu0 %v386
        %591 = vmatpush1.msra.mxu0 %v385
        %592 = vmatprep.subr.mxu0 %v388
        %593 = vmatpush1.msra.mxu0 %v387
        %594 = vmatprep.subr.mxu0 %v390
        %595 = vmatpush1.msra.mxu0 %v389
        %596 = vmatprep.subr.mxu0 %v392
        %597 = vmatpush1.msra.mxu0 %v391
        %598 = vmatprep.subr.mxu0 %v394
        %599 = vmatpush1.msra.mxu0 %v393
        %600 = vmatprep.subr.mxu0 %v396
        %601 = vmatpush1.msra.mxu0 %v395
        %602 = vmatprep.subr.mxu0 %v398
        %603 = vmatpush1.msra.mxu0 %v397
        %604 = vmatprep.subr.mxu0 %v400
        %605 = vmatpush1.msra.mxu0 %v399
        %606 = vmatprep.subr.mxu0 %v402
        %607 = vmatpush1.msra.mxu0 %v401
        %608 = vmatprep.subr.mxu0 %v404
        %609 = vmatpush1.msra.mxu0 %v403
        %610 = vmatprep.subr.mxu0 %v406
        %611 = vmatpush1.msra.mxu0 %v405
        %612 = vmatprep.subr.mxu0 %v408
        %613 = vmatpush1.msra.mxu0 %v407
        %614 = vmatprep.subr.mxu0 %v410
        %615 = vmatpush1.msra.mxu0 %v409
        %616 = vmatprep.subr.mxu0 %v412
        %617 = vmatpush1.msra.mxu0 %v411
        %618 = vmatprep.subr.mxu0 %v414
        %619 = vmatpush1.msra.mxu0 %v413
        %620 = vmatprep.subr.mxu0 %v416
        %621 = vmatpush1.msra.mxu0 %v415
        %622 = vmatprep.subr.mxu0 %v418
        %623 = vmatpush1.msra.mxu0 %v417
        %624 = vmatprep.subr.mxu0 %v420
        %625 = vmatpush1.msra.mxu0 %v419
        %626 = vmatprep.subr.mxu0 %v422
        %627 = vmatpush1.msra.mxu0 %v421
        %628 = vmatprep.subr.mxu0 %v424
        %629 = vmatpush1.msra.mxu0 %v423
        %630 = vmatprep.subr.mxu0 %v426
        %631 = vmatpush1.msra.mxu0 %v425
        %632 = vmatprep.subr.mxu0 %v428
        %633 = vmatpush1.msra.mxu0 %v427
        %634 = vmatprep.subr.mxu0 %v430
        %635 = vmatpush1.msra.mxu0 %v429
        %636 = vmatprep.subr.mxu0 %v432
        %637 = vmatpush1.msra.mxu0 %v431
        %638 = vmatprep.subr.mxu0 %v434
        %639 = vmatpush1.msra.mxu0 %v433
        %640 = vmatprep.subr.mxu0 %v436
        %641 = vmatpush1.msra.mxu0 %v435
        %642 = vmatprep.subr.mxu0 %v438
        %643 = vmatpush1.msra.mxu0 %v437
        %644 = vmatprep.subr.mxu0 %v440
        %645 = vmatpush1.msra.mxu0 %v439
        %646 = vmatprep.subr.mxu0 %v442
        %647 = vmatpush1.msra.mxu0 %v441
        %648 = vmatprep.subr.mxu0 %v444
        %649 = vmatpush1.msra.mxu0 %v443
        %650 = vmatprep.subr.mxu0 %v446
        %651 = vmatpush1.msra.mxu0 %v445
        %652 = vmatprep.subr.mxu0 %v448
        %653 = vmatpush1.msra.mxu0 %v447
        %654 = vmatprep.mubr.f32.mxu0 %v312
        %655 = vmatmul.mubr.f32.gmra.mrb[0].mxu0 %v311
        %v656 = vpop.f32.mrb[0].mxu0
        %v657 = vadd.f32 %v580, %v656
        %v658 = vpop.f32.mrb[0].mxu0
        %v659 = vadd.f32 %v582, %v658
        %660 = vmatprep.mubr.f32.mxu0 %v318
        %661 = vmatmul.mubr.f32.gmra.mrb[0].mxu0 %v317
        %v662 = vpop.f32.mrb[0].mxu0
        %v663 = vadd.f32 %v586, %v662
        %v664 = vpop.f32.mrb[0].mxu0
        %v665 = vadd.f32 %v588, %v664
        %666 = vdwg.mxu0
        %667 = vmatprep.subr.mxu0 %v450
        %668 = vmatpush1.msra.mxu0 %v449
        %669 = vmatprep.subr.mxu0 %v452
        %670 = vmatpush1.msra.mxu0 %v451
        %671 = vmatprep.subr.mxu0 %v454
        %672 = vmatpush1.msra.mxu0 %v453
        %673 = vmatprep.subr.mxu0 %v456
        %674 = vmatpush1.msra.mxu0 %v455
        %675 = vmatprep.subr.mxu0 %v458
        %676 = vmatpush1.msra.mxu0 %v457
        %677 = vmatprep.subr.mxu0 %v460
        %678 = vmatpush1.msra.mxu0 %v459
        %679 = vmatprep.subr.mxu0 %v462
        %680 = vmatpush1.msra.mxu0 %v461
        %681 = vmatprep.subr.mxu0 %v464
        %682 = vmatpush1.msra.mxu0 %v463
        %683 = vmatprep.subr.mxu0 %v466
        %684 = vmatpush1.msra.mxu0 %v465
        %685 = vmatprep.subr.mxu0 %v468
        %686 = vmatpush1.msra.mxu0 %v467
        %687 = vmatprep.subr.mxu0 %v470
        %688 = vmatpush1.msra.mxu0 %v469
        %689 = vmatprep.subr.mxu0 %v472
        %690 = vmatpush1.msra.mxu0 %v471
        %691 = vmatprep.subr.mxu0 %v474
        %692 = vmatpush1.msra.mxu0 %v473
        %693 = vmatprep.subr.mxu0 %v476
        %694 = vmatpush1.msra.mxu0 %v475
        %695 = vmatprep.subr.mxu0 %v478
        %696 = vmatpush1.msra.mxu0 %v477
        %697 = vmatprep.subr.mxu0 %v480
        %698 = vmatpush1.msra.mxu0 %v479
        %699 = vmatprep.subr.mxu0 %v482
        %700 = vmatpush1.msra.mxu0 %v481
        %701 = vmatprep.subr.mxu0 %v484
        %702 = vmatpush1.msra.mxu0 %v483
        %703 = vmatprep.subr.mxu0 %v486
        %704 = vmatpush1.msra.mxu0 %v485
        %705 = vmatprep.subr.mxu0 %v488
        %706 = vmatpush1.msra.mxu0 %v487
        %707 = vmatprep.subr.mxu0 %v490
        %708 = vmatpush1.msra.mxu0 %v489
        %709 = vmatprep.subr.mxu0 %v492
        %710 = vmatpush1.msra.mxu0 %v491
        %711 = vmatprep.subr.mxu0 %v494
        %712 = vmatpush1.msra.mxu0 %v493
        %713 = vmatprep.subr.mxu0 %v496
        %714 = vmatpush1.msra.mxu0 %v495
        %715 = vmatprep.subr.mxu0 %v498
        %716 = vmatpush1.msra.mxu0 %v497
        %717 = vmatprep.subr.mxu0 %v500
        %718 = vmatpush1.msra.mxu0 %v499
        %719 = vmatprep.subr.mxu0 %v502
        %720 = vmatpush1.msra.mxu0 %v501
        %721 = vmatprep.subr.mxu0 %v504
        %722 = vmatpush1.msra.mxu0 %v503
        %723 = vmatprep.subr.mxu0 %v506
        %724 = vmatpush1.msra.mxu0 %v505
        %725 = vmatprep.subr.mxu0 %v508
        %726 = vmatpush1.msra.mxu0 %v507
        %727 = vmatprep.subr.mxu0 %v510
        %728 = vmatpush1.msra.mxu0 %v509
        %729 = vmatprep.subr.mxu0 %v512
        %730 = vmatpush1.msra.mxu0 %v511
        %731 = vmatprep.mubr.f32.mxu0 %v314
        %732 = vmatmul.mubr.f32.gmra.mrb[0].mxu0 %v313
        %v733 = vpop.f32.mrb[0].mxu0
        %v734 = vadd.f32 %v657, %v733
        %v735 = vpop.f32.mrb[0].mxu0
        %v736 = vadd.f32 %v659, %v735
        %737 = vmatprep.mubr.f32.mxu0 %v320
        %738 = vmatmul.mubr.f32.gmra.mrb[0].mxu0 %v319
        %v739 = vpop.f32.mrb[0].mxu0
        %v740 = vadd.f32 %v663, %v739
        %v741 = vpop.f32.mrb[0].mxu0
        %v742 = vadd.f32 %v665, %v741
        %743 = vdwg.mxu0
        %v744 = vadd.f32 %v305, %v734
        %v745 = vadd.f32 %v306, %v736
        %v746 = vadd.f32 %v307, %v740
        %v747 = vadd.f32 %v308, %v742
        %748 = vst [vmem:[#allocation2] sm:$0xff] %v744
        %749 = vst [vmem:[#allocation2 + $0x8] sm:$0xff] %v745
        %750 = vst [vmem:[#allocation2 + $0x10] sm:$0xff] %v746
        %751 = vst [vmem:[#allocation2 + $0x18] sm:$0xff] %v747
        // Predicated region
        $region49: #{tpu_custom_call.1} parent=31 // pred_check
          %p752 = pneg %p285
        $region50: #{tpu_custom_call.1} parent=31 // pred_check_branch
          %754 = sbr.rel (%p752) target = $region52
        $region51: #{tpu_custom_call.1} parent=31 // pred_region
          %v755 = vld [vmem:[#allocation2] sm:$0xff]
          %v756 = vld [vmem:[#allocation2 + $0x8] sm:$0xff]
          %v757 = vld [vmem:[#allocation2 + $0x10] sm:$0xff]
          %v758 = vld [vmem:[#allocation2 + $0x18] sm:$0xff]
          %759 = vst [vmem:[%s277] sm:$0xff] %v755
          %760 = vst [vmem:[%s277 + $0x8] sm:$0xff] %v756
          %761 = vst [vmem:[%s277 + $0x10] sm:$0xff] %v757
          %762 = vst [vmem:[%s277 + $0x18] sm:$0xff] %v758
        $region52: #{tpu_custom_call.1} parent=31 // pred_fallthru
          _
        %s763 = sand.u32 %s132, 1
        %s764 = scalar_lea.sflag [#allocation5], %s763
        %s765 = sand.u32 %s132, 1
        %s766 = smul.addr %s765, 32
        %s767 = scalar_lea.vmem [#allocation9], %s766
        // Predicated region
        $region53: #{tpu_custom_call.1} parent=31 // pred_check
          %p768 = pneg %p142
        $region54: #{tpu_custom_call.1} parent=31 // pred_check_branch
          %770 = sbr.rel (%p768) target = $region56
        $region55: #{tpu_custom_call.1} parent=31 // pred_region
          %s771 = smul.u32 2, %s26
          %s772 = smul.u32 2, %s27
          %s774 = ssub.s32 512, 512
          %775 = vsyncadd %s764, %s774
          %s776 = smul.addr %s771, 6
          %s777 = sadd.s32 %s772, %s776
          %s778 = smul.addr %s777, 128
          %s779 = scalar_lea.hbm %s3, %s778
          %s780 = sshll.u32 %s767, 4
          %s781 = int_to_ptr.vmem [resolvable:$true] %s780
          %786 = dma.vmem_to_hbm [thread:$0]  %s781, 512, %s779, %s764, 256, 768, 16
        $region56: #{tpu_custom_call.1} parent=31 // pred_fallthru
          _
      $region32: #{tpu_custom_call.1} parent=5 // pred_fallthru
        _
      %p787 = scmp.le.s32.totalorder 2, %s16
      // Predicated region
      $region57: #{tpu_custom_call.1} parent=5 // pred_check
        %p788 = pneg %p787
      $region58: #{tpu_custom_call.1} parent=5 // pred_check_branch
        %790 = sbr.rel (%p788) target = $region60
      $region59: #{tpu_custom_call.1} parent=5 // pred_region
        %s791 = ssub.s32 %s16, 2
        // Predicated region
        $region61: #{tpu_custom_call.1} parent=59 // pred_check
          %p792 = pneg %p148
        $region62: #{tpu_custom_call.1} parent=59 // pred_check_branch
          %794 = sbr.rel (%p792) target = $region64
        $region63: #{tpu_custom_call.1} parent=59 // pred_region
          %s795 = sand.u32 %s133, 1
          %s796 = scalar_lea.sflag [#allocation5], %s795
          %s797 = sand.u32 %s133, 1
          %s798 = smul.addr %s797, 32
          %s799 = scalar_lea.vmem [#allocation9], %s798
          %800 = dma.done %s796, 512
        $region64: #{tpu_custom_call.1} parent=59 // pred_fallthru
          _
      $region60: #{tpu_custom_call.1} parent=5 // pred_fallthru
        _
    $region6: #{tpu_custom_call.1} parent=1 // loop_footer
      %s20 = sadd.s32 1, %s16
    $region7: #{tpu_custom_call.1} parent=1 // loop_footer_branch
      %15 = sbr.rel target = $region3
    $region8: #{tpu_custom_call.1} parent=1 // loop_exit
      _
    %801 = vsyncpa [#allocation4], 1
    %s802 = scalar_lea.sflag [#allocation4], 1
    %803 = vsyncpa %s802, 1
    %804 = vsyncpa [#allocation7], 1
    %s805 = scalar_lea.sflag [#allocation7], 1
    %806 = vsyncpa %s805, 1
    %807 = vsyncpa [#allocation5], 1
    %s808 = scalar_lea.sflag [#allocation5], 1
    %809 = vsyncpa %s808, 1

</llo_original>
